<compile_context>
chip_gen: v6e
topology: v6e:2x2x1
jax: 0.10.0
libtpu: 0.0.40
codegen_flags: <defaults>
</compile_context>

<pallas_src>
import jax
import jax.numpy as jnp
import numpy as np
from jax import lax
from jax.experimental import pallas as pl
from jax.experimental.pallas import tpu as pltpu


def _round_up(x, m):
    return (x + m - 1) // m * m


def _make_kernel(TB, L, n_embs, n_docs, D):
    """Kernel closure over the static tile sizes."""

    def kernel(ids_ref,                                        # scalar prefetch (SMEM), (B_pad*L,)
               logit_ref, mask_ref, qn_ref, embw_ref, docs_ref, table_ref,
               out_ref,
               gathered, sem):
        t = pl.program_id(0)
        base = t * (TB * L)

        # ---- 1) issue all TB*L embedding-row gathers on one shared DMA sem ----
        def issue(i, carry):
            row = ids_ref[base + i]
            pltpu.make_async_copy(table_ref.at[pl.ds(row, 1)],
                                  gathered.at[pl.ds(i, 1)],
                                  sem.at[0]).start()
            return carry

        lax.fori_loop(0, TB * L, issue, 0)

        # ---- 3a) independent of the gather: per-query softmax over embs_weights[:n] ----
        qn = qn_ref[...]                                       # (TB, 1) int32
        ew = embw_ref[...]                                     # (1, n_embs) f32
        idx = lax.broadcasted_iota(jnp.int32, (TB, n_embs), 1)
        valid = idx < qn                                       # (TB, n_embs) bool
        masked = jnp.where(valid, ew, jnp.float32(-1e30))
        mm = jnp.max(masked, axis=1, keepdims=True)
        ee = jnp.exp(masked - mm) * valid.astype(jnp.float32)
        w_emb = ee * pl.reciprocal(
            jnp.maximum(jnp.sum(ee, axis=1, keepdims=True), jnp.float32(1e-30)))

        # top-docs contribution, also independent of the gathered rows
        docs_part = jnp.sum(docs_ref[...] * w_emb[:, 1:, None], axis=1)   # (TB, D)

        # ---- wait for all TB*L row copies with one aggregated wait ----
        pltpu.make_async_copy(gathered, gathered, sem.at[0]).wait()

        # ---- 2) masked token softmax (collapsed normalization) + weighted average ----
        emb = gathered[...].reshape(TB, L, D)                  # (TB, L, D)
        s = logit_ref[...]                                     # (TB, L) token-weight logits
        m = jnp.max(s, axis=1, keepdims=True)
        e = jnp.exp(s - m) * mask_ref[...]                     # (TB, L)
        w = e * pl.reciprocal(
            jnp.maximum(jnp.sum(e, axis=1, keepdims=True), jnp.float32(1e-30)))
        q_light = jnp.sum(emb * w[:, :, None], axis=1)         # (TB, D)

        # ---- 3b) combine q_light with the top-docs embeddings ----
        out_ref[...] = (w_emb[:, 0:1] * q_light + docs_part).astype(out_ref.dtype)

    return kernel


def avg_emb_query_estimate(input_ids, attention_mask, q_n_embs,
                           tok_emb_table, tok_embs_weights, embs_weights,
                           top_docs_embs, *, max_tile=128):
    B, L = input_ids.shape
    V, D = tok_emb_table.shape
    n_docs = top_docs_embs.shape[1]
    n_embs = n_docs + 1

    TB = min(max_tile, _round_up(B, 8))      # queries per grid step (multiple of 8)
    B_pad = _round_up(B, TB)
    pad = B_pad - B

    ids = input_ids.astype(jnp.int32)                          # (B, L)
    # token-weight logits via a plain XLA gather (removes the folded weight column)
    tok_logits = tok_embs_weights.astype(jnp.float32)[ids]     # (B, L)
    mask = attention_mask.astype(jnp.float32)                  # (B, L)
    qn = q_n_embs.reshape(B, 1).astype(jnp.int32)              # (B, 1)
    docs = top_docs_embs.astype(jnp.float32)                   # (B, n_docs, D)

    if pad:
        ids = jnp.pad(ids, ((0, pad), (0, 0)))
        tok_logits = jnp.pad(tok_logits, ((0, pad), (0, 0)))
        mask = jnp.pad(mask, ((0, pad), (0, 0)))
        qn = jnp.pad(qn, ((0, pad), (0, 0)))
        docs = jnp.pad(docs, ((0, pad), (0, 0), (0, 0)))

    ids_flat = ids.reshape(B_pad * L)                          # 1-D -> minimal SMEM padding
    embw = embs_weights.reshape(1, n_embs).astype(jnp.float32)
    table = tok_emb_table.astype(jnp.float32)                  # (V, D), stays in HBM

    kernel = _make_kernel(TB, L, n_embs, n_docs, D)

    grid_spec = pltpu.PrefetchScalarGridSpec(
        num_scalar_prefetch=1,
        grid=(B_pad // TB,),
        in_specs=[
            pl.BlockSpec((TB, L), lambda t, ids: (t, 0)),              # token logits
            pl.BlockSpec((TB, L), lambda t, ids: (t, 0)),              # attention mask
            pl.BlockSpec((TB, 1), lambda t, ids: (t, 0)),              # q_n_embs
            pl.BlockSpec((1, n_embs), lambda t, ids: (0, 0)),          # embs weights
            pl.BlockSpec((TB, n_docs, D), lambda t, ids: (t, 0, 0)),   # top docs embs
            pl.BlockSpec(memory_space=pl.ANY),                         # embedding table (HBM)
        ],
        out_specs=pl.BlockSpec((TB, D), lambda t, ids: (t, 0)),
        scratch_shapes=[
            pltpu.VMEM((TB * L, D), jnp.float32),     # gathered embedding rows
            pltpu.SemaphoreType.DMA((1,)),            # one shared DMA semaphore
        ],
    )

    out = pl.pallas_call(
        kernel,
        out_shape=jax.ShapeDtypeStruct((B_pad, D), jnp.float32),
        grid_spec=grid_spec,
        compiler_params=pltpu.CompilerParams(
            dimension_semantics=("parallel",),
            vmem_limit_bytes=32 * 1024 * 1024),
    )(ids_flat, tok_logits, mask, qn, embw, docs, table)
    return out[:B]


def reference_forward(input_ids, attention_mask, q_n_embs, table, tokw, embw, docs):
    """Plain-JAX mirror of the PyTorch forward (WEIGHTED / WEIGHTED, q_only=False)."""
    am = attention_mask.astype(jnp.float32)
    q_tok_embs = table[input_ids]                        # (B, L, D)
    q_tok_embs = q_tok_embs * am[:, :, None]
    q_tok_w = jax.nn.softmax(tokw[input_ids], axis=-1)   # (B, L)
    q_tok_w = q_tok_w * am
    q_tok_w = q_tok_w / q_tok_w.sum(-1, keepdims=True)
    q_light = jnp.sum(q_tok_embs * q_tok_w[:, :, None], axis=1)

    B = input_ids.shape[0]
    n_embs = embw.shape[0]
    rows = []
    for b in range(B):
        n = int(q_n_embs[b])
        row = jnp.zeros((n_embs,), jnp.float32)
        if n > 0:
            row = row.at[:n].set(jax.nn.softmax(embw[:n]))
        rows.append(row)
    ew = jnp.stack(rows)                                 # (B, n_embs)
    embs = jnp.concatenate([q_light[:, None, :], docs], axis=1)
    return jnp.sum(embs * ew[:, :, None], axis=1)


if __name__ == "__main__":
    B, L, V, D, n_docs = 2, 8, 128, 128, 3
    key = jax.random.PRNGKey(0)
    k1, k2, k3, k4, k5 = jax.random.split(key, 5)

    # deterministic synthetic "parameters" (module __init__ shapes)
    tok_emb_table = jax.random.normal(k2, (V, D), jnp.float32) * 0.02   # self.tok_embs
    tok_embs_weights = jax.random.normal(k3, (V,), jnp.float32) * 0.1   # self.tok_embs_weights
    embs_weights = jax.random.normal(k4, (n_docs + 1,), jnp.float32)    # self._embs_weights

    # deterministic synthetic inputs
    input_ids = jax.random.randint(k1, (B, L), 0, V, dtype=jnp.int32)
    attention_mask = jnp.array([[1, 1, 1, 1, 1, 1, 1, 1],
                                [1, 1, 1, 1, 1, 0, 0, 0]], dtype=jnp.int32)

    # TODO(synk): BM25 sparse retrieval + doc_encoder are external I/O; their
    # outputs (top_docs_embs, q_n_embs) are provided as precomputed inputs.
    q_n_embs = jnp.array([1 + n_docs, 2], dtype=jnp.int32)  # 1 + #retrieved docs
    top_docs_embs = jax.random.normal(k5, (B, n_docs, D), jnp.float32)
    doc_valid = (jnp.arange(n_docs)[None, :] < (q_n_embs - 1)[:, None])
    top_docs_embs = top_docs_embs * doc_valid[:, :, None].astype(jnp.float32)

    out = avg_emb_query_estimate(input_ids, attention_mask, q_n_embs,
                                 tok_emb_table, tok_embs_weights, embs_weights,
                                 top_docs_embs)
    out = jax.block_until_ready(out)

    ref = reference_forward(input_ids, attention_mask, q_n_embs,
                            tok_emb_table, tok_embs_weights, embs_weights,
                            top_docs_embs)
    np.testing.assert_allclose(np.asarray(out), np.asarray(ref),
                               rtol=1e-4, atol=1e-5)
    print("KERNEL_OK")
</pallas_src>

<mosaic_0001>
module attributes {stable_mosaic.version = 11 : i64} {
  func.func @kernel(%arg0: i32, %arg1: memref<64xi32, #tpu.memory_space<smem>>, %arg2: memref<8x8xf32, #tpu.memory_space<vmem>>, %arg3: memref<8x8xf32, #tpu.memory_space<vmem>>, %arg4: memref<8x1xi32, #tpu.memory_space<vmem>>, %arg5: memref<1x4xf32, #tpu.memory_space<vmem>>, %arg6: memref<8x3x128xf32, #tpu.memory_space<vmem>>, %arg7: memref<128x128xf32, #tpu.memory_space<any>>, %arg8: memref<8x128xf32, #tpu.memory_space<vmem>>, %arg9: memref<64x128xf32, #tpu.memory_space<vmem>>, %arg10: memref<1x!tpu.dma_semaphore, #tpu.memory_space<semaphore_mem>>) attributes {dimension_semantics = [#tpu.dimension_semantics<parallel>], iteration_bounds = array<i64: 1>, scalar_prefetch = 1 : i64, scratch_operands = 2 : i64, tpu.core_type = #tpu.core_type<tc>, window_params = [{transform_indices = @transform_0, window_bounds = array<i64: 8, 8>}, {transform_indices = @transform_1, window_bounds = array<i64: 8, 8>}, {transform_indices = @transform_2, window_bounds = array<i64: 8, 1>}, {pipeline_mode = #tpu.pipeline_mode<synchronous>, transform_indices = @transform_3, window_bounds = array<i64: 1, 4>}, {transform_indices = @transform_4, window_bounds = array<i64: 8, 3, 128>}, {}, {transform_indices = @transform_6, window_bounds = array<i64: 8, 128>}]} {
    %c64_i32 = arith.constant 64 : i32
    %0 = arith.muli %arg0, %c64_i32 : i32
    %c0_i32 = arith.constant 0 : i32
    %c64_i32_0 = arith.constant 64 : i32
    %1 = arith.addi %c0_i32, %c64_i32_0 : i32
    %c1_i32 = arith.constant 1 : i32
    scf.for %arg11 = %c0_i32 to %1 step %c1_i32  : i32 {
      %60 = arith.addi %0, %arg11 : i32
      %61 = arith.index_cast %60 : i32 to index
      %62 = memref.load %arg1[%61] : memref<64xi32, #tpu.memory_space<smem>>
      %c0_i32_25 = arith.constant 0 : i32
      %c0_i32_26 = arith.constant 0 : i32
      %63 = tpu.memref_slice %arg7[%62, %c0_i32_26] : memref<128x128xf32, #tpu.memory_space<any>> -> memref<1x128xf32, #tpu.memory_space<any>>
      %c0_i32_27 = arith.constant 0 : i32
      %64 = tpu.memref_slice %arg9[%arg11, %c0_i32_27] : memref<64x128xf32, #tpu.memory_space<vmem>> -> memref<1x128xf32, #tpu.memory_space<vmem>>
      %65 = tpu.memref_slice %arg10[%c0_i32_25] : memref<1x!tpu.dma_semaphore, #tpu.memory_space<semaphore_mem>> -> memref<1x!tpu.dma_semaphore, #tpu.memory_space<semaphore_mem>>
      %66 = tpu.memref_squeeze %65 : memref<1x!tpu.dma_semaphore, #tpu.memory_space<semaphore_mem>> -> memref<!tpu.dma_semaphore, #tpu.memory_space<semaphore_mem>>
      tpu.enqueue_dma source(%63 : memref<1x128xf32, #tpu.memory_space<any>>) target(%64 : memref<1x128xf32, #tpu.memory_space<vmem>>) target_semaphore(%66 : memref<!tpu.dma_semaphore, #tpu.memory_space<semaphore_mem>>)
    }
    %c64_i32_1 = arith.constant 64 : i32
    %c0 = arith.constant 0 : index
    %c0_2 = arith.constant 0 : index
    %2 = vector.load %arg4[%c0, %c0_2] : memref<8x1xi32, #tpu.memory_space<vmem>>, vector<8x1xi32>
    %c0_3 = arith.constant 0 : index
    %c0_4 = arith.constant 0 : index
    %3 = vector.load %arg5[%c0_3, %c0_4] : memref<1x4xf32, #tpu.memory_space<vmem>>, vector<1x4xf32>
    %4 = tpu.iota {dimensions = array<i32: 1>} : vector<8x4xi32>
    %5 = vector.broadcast %2 : vector<8x1xi32> to vector<8x4xi32>
    %6 = arith.cmpi slt, %4, %5 : vector<8x4xi32>
    %cst = arith.constant -1.000000e+30 : f32
    %7 = vector.shape_cast %3 : vector<1x4xf32> to vector<1x4xf32>
    %8 = vector.broadcast %7 : vector<1x4xf32> to vector<8x4xf32>
    %9 = vector.broadcast %cst : f32 to vector<8x4xf32>
    %10 = arith.select %6, %8, %9 : vector<8x4xi1>, vector<8x4xf32>
    %cst_5 = arith.constant dense<0xFF800000> : vector<8xf32>
    %11 = vector.multi_reduction <maximumf>, %10, %cst_5 [1] : vector<8x4xf32> to vector<8xf32>
    %12 = vector.shape_cast %11 : vector<8xf32> to vector<8x1xf32>
    %13 = vector.broadcast %12 : vector<8x1xf32> to vector<8x4xf32>
    %14 = arith.subf %10, %13 : vector<8x4xf32>
    %15 = math.exp %14 : vector<8x4xf32>
    %16 = arith.extui %6 : vector<8x4xi1> to vector<8x4xi32>
    %17 = arith.sitofp %16 : vector<8x4xi32> to vector<8x4xf32>
    %18 = arith.mulf %15, %17 : vector<8x4xf32>
    %cst_6 = arith.constant dense<0.000000e+00> : vector<8xf32>
    %19 = vector.multi_reduction <add>, %18, %cst_6 [1] : vector<8x4xf32> to vector<8xf32>
    %20 = vector.shape_cast %19 : vector<8xf32> to vector<8x1xf32>
    %cst_7 = arith.constant 1.000000e-30 : f32
    %21 = vector.broadcast %cst_7 : f32 to vector<8x1xf32>
    %22 = arith.maximumf %20, %21 : vector<8x1xf32>
    %23 = tpu.reciprocal %22 : vector<8x1xf32> -> vector<8x1xf32>
    %24 = vector.broadcast %23 : vector<8x1xf32> to vector<8x4xf32>
    %25 = arith.mulf %18, %24 : vector<8x4xf32>
    %c0_8 = arith.constant 0 : index
    %c0_9 = arith.constant 0 : index
    %c0_10 = arith.constant 0 : index
    %26 = vector.load %arg6[%c0_8, %c0_9, %c0_10] : memref<8x3x128xf32, #tpu.memory_space<vmem>>, vector<8x3x128xf32>
    %27 = vector.extract_strided_slice %25 {offsets = [0, 1], sizes = [8, 3], strides = [1, 1]} : vector<8x4xf32> to vector<8x3xf32>
    %28 = vector.shape_cast %27 : vector<8x3xf32> to vector<8x3x1xf32>
    %29 = vector.broadcast %28 : vector<8x3x1xf32> to vector<8x3x128xf32>
    %30 = arith.mulf %26, %29 : vector<8x3x128xf32>
    %cst_11 = arith.constant dense<0.000000e+00> : vector<8x128xf32>
    %31 = vector.multi_reduction <add>, %30, %cst_11 [1] : vector<8x3x128xf32> to vector<8x128xf32>
    %c0_i32_12 = arith.constant 0 : i32
    %32 = tpu.memref_slice %arg10[%c0_i32_12] : memref<1x!tpu.dma_semaphore, #tpu.memory_space<semaphore_mem>> -> memref<1x!tpu.dma_semaphore, #tpu.memory_space<semaphore_mem>>
    %33 = tpu.memref_squeeze %32 : memref<1x!tpu.dma_semaphore, #tpu.memory_space<semaphore_mem>> -> memref<!tpu.dma_semaphore, #tpu.memory_space<semaphore_mem>>
    tpu.wait_dma2 semaphore(%33 : memref<!tpu.dma_semaphore, #tpu.memory_space<semaphore_mem>>) src(%arg9 : memref<64x128xf32, #tpu.memory_space<vmem>>) dst(%arg9 : memref<64x128xf32, #tpu.memory_space<vmem>>)
    %c0_13 = arith.constant 0 : index
    %c0_14 = arith.constant 0 : index
    %34 = vector.load %arg9[%c0_13, %c0_14] : memref<64x128xf32, #tpu.memory_space<vmem>>, vector<64x128xf32>
    %35 = vector.shape_cast %34 : vector<64x128xf32> to vector<8x8x128xf32>
    %c0_15 = arith.constant 0 : index
    %c0_16 = arith.constant 0 : index
    %36 = vector.load %arg2[%c0_15, %c0_16] : memref<8x8xf32, #tpu.memory_space<vmem>>, vector<8x8xf32>
    %cst_17 = arith.constant dense<0xFF800000> : vector<8xf32>
    %37 = vector.multi_reduction <maximumf>, %36, %cst_17 [1] : vector<8x8xf32> to vector<8xf32>
    %38 = vector.shape_cast %37 : vector<8xf32> to vector<8x1xf32>
    %39 = vector.broadcast %38 : vector<8x1xf32> to vector<8x8xf32>
    %40 = arith.subf %36, %39 : vector<8x8xf32>
    %41 = math.exp %40 : vector<8x8xf32>
    %c0_18 = arith.constant 0 : index
    %c0_19 = arith.constant 0 : index
    %42 = vector.load %arg3[%c0_18, %c0_19] : memref<8x8xf32, #tpu.memory_space<vmem>>, vector<8x8xf32>
    %43 = arith.mulf %41, %42 : vector<8x8xf32>
    %cst_20 = arith.constant dense<0.000000e+00> : vector<8xf32>
    %44 = vector.multi_reduction <add>, %43, %cst_20 [1] : vector<8x8xf32> to vector<8xf32>
    %45 = vector.shape_cast %44 : vector<8xf32> to vector<8x1xf32>
    %cst_21 = arith.constant 1.000000e-30 : f32
    %46 = vector.broadcast %cst_21 : f32 to vector<8x1xf32>
    %47 = arith.maximumf %45, %46 : vector<8x1xf32>
    %48 = tpu.reciprocal %47 : vector<8x1xf32> -> vector<8x1xf32>
    %49 = vector.broadcast %48 : vector<8x1xf32> to vector<8x8xf32>
    %50 = arith.mulf %43, %49 : vector<8x8xf32>
    %51 = vector.shape_cast %50 : vector<8x8xf32> to vector<8x8x1xf32>
    %52 = vector.broadcast %51 : vector<8x8x1xf32> to vector<8x8x128xf32>
    %53 = arith.mulf %35, %52 : vector<8x8x128xf32>
    %cst_22 = arith.constant dense<0.000000e+00> : vector<8x128xf32>
    %54 = vector.multi_reduction <add>, %53, %cst_22 [1] : vector<8x8x128xf32> to vector<8x128xf32>
    %55 = vector.extract_strided_slice %25 {offsets = [0, 0], sizes = [8, 1], strides = [1, 1]} : vector<8x4xf32> to vector<8x1xf32>
    %56 = vector.broadcast %55 : vector<8x1xf32> to vector<8x128xf32>
    %57 = arith.mulf %56, %54 : vector<8x128xf32>
    %58 = arith.addf %57, %31 : vector<8x128xf32>
    %c0_23 = arith.constant 0 : index
    %c0_24 = arith.constant 0 : index
    %59 = vector.load %arg8[%c0_23, %c0_24] : memref<8x128xf32, #tpu.memory_space<vmem>>, vector<8x128xf32>
    tpu.vector_store %arg8[%c0_23, %c0_24], %58 {strides = array<i32>} : memref<8x128xf32, #tpu.memory_space<vmem>>, vector<8x128xf32>,
    return
  }
  func.func @transform_0(%arg0: i32, %arg1: memref<64xi32, #tpu.memory_space<smem>>) -> (i32, i32) {
    %c0_i32 = arith.constant 0 : i32
    %c0_i32_0 = arith.constant 0 : i32
    return %arg0, %c0_i32 : i32, i32
  }
  func.func @transform_1(%arg0: i32, %arg1: memref<64xi32, #tpu.memory_space<smem>>) -> (i32, i32) {
    %c0_i32 = arith.constant 0 : i32
    %c0_i32_0 = arith.constant 0 : i32
    return %arg0, %c0_i32 : i32, i32
  }
  func.func @transform_2(%arg0: i32, %arg1: memref<64xi32, #tpu.memory_space<smem>>) -> (i32, i32) {
    %c0_i32 = arith.constant 0 : i32
    %c0_i32_0 = arith.constant 0 : i32
    return %arg0, %c0_i32 : i32, i32
  }
  func.func @transform_3(%arg0: i32, %arg1: memref<64xi32, #tpu.memory_space<smem>>) -> (i32, i32) {
    %c0_i32 = arith.constant 0 : i32
    %c0_i32_0 = arith.constant 0 : i32
    %c0_i32_1 = arith.constant 0 : i32
    return %c0_i32, %c0_i32_0 : i32, i32
  }
  func.func @transform_4(%arg0: i32, %arg1: memref<64xi32, #tpu.memory_space<smem>>) -> (i32, i32, i32) {
    %c0_i32 = arith.constant 0 : i32
    %c0_i32_0 = arith.constant 0 : i32
    %c0_i32_1 = arith.constant 0 : i32
    return %arg0, %c0_i32, %c0_i32_0 : i32, i32, i32
  }
  func.func @transform_6(%arg0: i32, %arg1: memref<64xi32, #tpu.memory_space<smem>>) -> (i32, i32) {
    %c0_i32 = arith.constant 0 : i32
    %c0_i32_0 = arith.constant 0 : i32
    return %arg0, %c0_i32 : i32, i32
  }
}

</mosaic_0001>

<llo_original>
// kernel: tpu_custom_call.1
$region0: #{tpu_custom_call.1}
  #allocation0 [shape = 'u32[]', space=smem, size = 0x4, offset = 0x4, fixed_abs, tag = 'smem constant byte address 0x4 - core index']
  #allocation1 [shape = 'u32[144,128]{1,0:T(1,128)}', space=vmem, size = 0x12000, scoped, tag = 'internal scratch']
  #allocation2 [shape = 'f32[64,128]{1,0:T(8,128)}', space=vmem, size = 0x8000, scoped, tag = 'scratch operand']
  #allocation3 [shape = 's32[1]{0}', space=sflag, size = 0x4, scoped, tag = 'scratch operand']
  #allocation4 [shape = 's32[1]{0}', space=sflag, size = 0x4, scoped, tag = 'scoped memory for tpu_custom_call.1']
  #allocation5 [shape = 'u8[512]{0}', space=smem, size = 0x200, scoped, tag = 'prefetched SMEM operand 0']
  #allocation8 [shape = 's32[]', space=sflag, size = 0x4, offset = 0, fixed_abs, tag = 'sflag constant byte address 0x0 - dummy sync flag']
  #allocation9 [shape = 's32[]', space=sflag, size = 0x4, offset = 0, fixed_abs, tag = 'sflag constant byte address 0x0 - dummy sync flag']
  #allocation10 [shape = 'u32[]', space=smem, size = 0x4, offset = 0x44, fixed_abs, tag = 'smem constant byte address 0x44 - assertion arg 0']
  #allocation11 [shape = 'u32[]', space=smem, size = 0x4, offset = 0x48, fixed_abs, tag = 'smem constant byte address 0x48 - assertion arg 1']
  %s0 = inlined_call_operand.vmem [shape: s32[64], index: 0, kind: input, shape index: {}]
  %s1 = inlined_call_operand.vmem [shape: f32[8,8], index: 1, kind: input, shape index: {}]
  %s2 = inlined_call_operand.vmem [shape: f32[8,8], index: 2, kind: input, shape index: {}]
  %s3 = inlined_call_operand.vmem [shape: s32[8,1], index: 3, kind: input, shape index: {}]
  %s4 = inlined_call_operand.vmem [shape: f32[1,4], index: 4, kind: input, shape index: {}]
  %s5 = inlined_call_operand.vmem [shape: f32[8,3,128], index: 5, kind: input, shape index: {}]
  %s6 = inlined_call_operand.hbm [shape: f32[128,128], index: 6, kind: input, shape index: {}]
  %s7 = inlined_call_operand.hbm [shape: f32[8,128], index: 7, kind: output, shape index: {}]
  %s8 = sld [smem:[#allocation0]]
  $region41: #{tpu_custom_call.1} parent=0
    _
  %s10 = ssub.s32 1, %s8
  %s11 = scalar_select 0, %s10, %s8
  %s12 = sshll.u32 %s0, 4
  %s13 = int_to_ptr.vmem [resolvable:$true] %s12
  %15 = dma.vmem_to_smem %s13, 16, [#allocation5], [#allocation4]
  %16 = dma.done [#allocation4], 16
  %17 = sfence
  $region1: #{tpu_custom_call.1} parent=0
    #allocation6 [shape = 'u8[4096]{0}', space=vmem, size = 0x1000, scoped, tag = 'output window, operand 0, single buffered']
    #allocation7 [shape = 's32[1]{0}', space=sflag, size = 0x4, scoped, tag = 'scoped memory for tpu_custom_call.1']
    %18 = vsyncpa [#allocation7], 0
    // Predicated region
    $region2: #{tpu_custom_call.1} parent=1 // pred_check
      _
    $region3: #{tpu_custom_call.1} parent=1 // pred_check_branch
      %20 = sbr.rel (0) target = $region5
    $region4: #{tpu_custom_call.1} parent=1 // pred_region
      _
    $region5: #{tpu_custom_call.1} parent=1 // pred_fallthru
      _
    // Predicated region
    $region6: #{tpu_custom_call.1} parent=1 // pred_check
      _
    $region7: #{tpu_custom_call.1} parent=1 // pred_check_branch
      %22 = sbr.rel (0) target = $region9
    $region8: #{tpu_custom_call.1} parent=1 // pred_region
      _
    $region9: #{tpu_custom_call.1} parent=1 // pred_fallthru
      _
    // Predicated region
    $region10: #{tpu_custom_call.1} parent=1 // pred_check
      _
    $region11: #{tpu_custom_call.1} parent=1 // pred_check_branch
      %24 = sbr.rel (0) target = $region13
    $region12: #{tpu_custom_call.1} parent=1 // pred_region
      _
    $region13: #{tpu_custom_call.1} parent=1 // pred_fallthru
      _
    // Predicated region
    $region14: #{tpu_custom_call.1} parent=1 // pred_check
      _
    $region15: #{tpu_custom_call.1} parent=1 // pred_check_branch
      %26 = sbr.rel (0) target = $region17
    $region16: #{tpu_custom_call.1} parent=1 // pred_region
      _
    $region17: #{tpu_custom_call.1} parent=1 // pred_fallthru
      _
    // Predicated region
    $region18: #{tpu_custom_call.1} parent=1 // pred_check
      _
    $region19: #{tpu_custom_call.1} parent=1 // pred_check_branch
      %28 = sbr.rel (0) target = $region21
    $region20: #{tpu_custom_call.1} parent=1 // pred_region
      _
    $region21: #{tpu_custom_call.1} parent=1 // pred_fallthru
      _
    %s29 = smul.u32 0, 64
    loop: start=0, step=1, limit=64
    $region22: #{tpu_custom_call.1} parent=1 // loop_pre_header
      _
    $region23: #{tpu_custom_call.1} parent=1 // loop_header
      %s31 = sphi 0, %s35
      %p32 = scmp.ge.s32.totalorder %s31, 64
    $region24: #{tpu_custom_call.1} parent=1 // loop_header_branch
      %34 = sbr.rel (%p32) target = $region28
    $region25: #{tpu_custom_call.1} parent=1 // loop_body
      %s36 = sadd.s32 %s29, %s31
      %s37 = sld [smem:[#allocation5 + %s36]]
      %s38 = smul.addr %s37, 16
      %s39 = scalar_lea.hbm %s6, %s38
      %s40 = scalar_lea.vmem [#allocation2], %s31
      // Predicated region
      $region29: #{tpu_custom_call.1} parent=25 // pred_check
        _
      $region30: #{tpu_custom_call.1} parent=25 // pred_check_branch
        %42 = sbr.rel target = $region32
      $region31: #{tpu_custom_call.1} parent=25 // pred_region
        %43 = sst [smem:[#allocation10]] [#allocation9]
        %44 = sst [smem:[#allocation11]] [#allocation8]
      $region32: #{tpu_custom_call.1} parent=25 // pred_fallthru
        _
      %46 = shalt.err (0)
      %s48 = sshll.u32 %s40, 4
      %s49 = int_to_ptr.vmem [resolvable:$true] %s48
      %51 = dma.hbm_to_vmem [thread:$0]  %s39, 16, %s49, [#allocation3]
    $region26: #{tpu_custom_call.1} parent=1 // loop_footer
      %s35 = sadd.s32 1, %s31
    $region27: #{tpu_custom_call.1} parent=1 // loop_footer_branch
      %30 = sbr.rel target = $region23
    $region28: #{tpu_custom_call.1} parent=1 // loop_exit
      _
    %v52 = vld [vmem:[%s3] sm:$0xff]
    %v53 = vld [vmem:[%s4] sm:$0x1]
    %v54 = vlaneseq
    %v55 = vand.u32 %v54, 127
    %56 = vset.pattern.permute.xlu0 0
    %57 = vperm.xlu0 %56, %v52
    %v58 = vpop.permute.xlu0 %57
    %vm59 = vcmp.lt.s32.totalorder %v55, %v58
    %v61 = vlaneseq
    %v62 = vshrl.u32 %v61, 7
    %v63 = vsub.s32 0, %v62
    %v64 = vrot.slane %v53, %v63
    %v66 = vsel %vm59, %v64, -1e+30
    %vm67 = vcmask 31744
    %v68 = vsel %vm67, %v66, -inf
    %69 = vmax.xlane.f32.xlu0 %v68
    %v70 = vpop.xlane.xlu0 %69
    %v71 = vsub.f32 %v66, %v70
    %v72 = vmul.f32 %v71, 1.442695
    %v73 = vpow.pop %v72
    %v74 = vsel %vm59, 1, 0
    %v75 = vcvt.s32.f32 %v74
    %v76 = vmul.f32 %v73, %v75
    %v77 = vsel %vm67, %v76, 0.0
    %78 = vadd.xlane.f32.xlu0 %v77
    %v79 = vpop.xlane.xlu0 %78
    %v80 = vmax.f32 %v79, 1e-30
    %v81 = vrcp.pop %v80
    %v82 = vmul.f32 %v76, %v81
    %v83 = vld [vmem:[%s5] sm:$0x7]
    %v84 = vld [vmem:[%s5 + $0x4] sm:$0x7]
    %v85 = vld [vmem:[%s5 + $0x8] sm:$0x7]
    %v86 = vld [vmem:[%s5 + $0xc] sm:$0x7]
    %v87 = vld [vmem:[%s5 + $0x10] sm:$0x7]
    %v88 = vld [vmem:[%s5 + $0x14] sm:$0x7]
    %v89 = vld [vmem:[%s5 + $0x18] sm:$0x7]
    %v90 = vld [vmem:[%s5 + $0x1c] sm:$0x7]
    %v91 = vlaneseq
    %v92 = vshrl.u32 %v91, 7
    %v93 = vsub.s32 0, %v92
    %v94 = vrot.slane %v82, %v93
    %s96 = sor.u32 256, 1
    %97 = vbcast.lane.b32.xlu0 %v94, %s96
    %v98 = vpop.permute.xlu0 %97
    %v99 = vlaneseq
    %v100 = vshrl.u32 %v99, 7
    %v101 = vsub.s32 1, %v100
    %v102 = vrot.slane %v82, %v101
    %s104 = sor.u32 256, 1
    %105 = vbcast.lane.b32.xlu0 %v102, %s104
    %v106 = vpop.permute.xlu0 %105
    %v107 = vlaneseq
    %v108 = vshrl.u32 %v107, 7
    %v109 = vsub.s32 2, %v108
    %v110 = vrot.slane %v82, %v109
    %s112 = sor.u32 256, 1
    %113 = vbcast.lane.b32.xlu0 %v110, %s112
    %v114 = vpop.permute.xlu0 %113
    %v115 = vlaneseq
    %v116 = vshrl.u32 %v115, 7
    %v117 = vsub.s32 3, %v116
    %v118 = vrot.slane %v82, %v117
    %s120 = sor.u32 256, 1
    %121 = vbcast.lane.b32.xlu0 %v118, %s120
    %v122 = vpop.permute.xlu0 %121
    %v123 = vlaneseq
    %v124 = vshrl.u32 %v123, 7
    %v125 = vsub.s32 4, %v124
    %v126 = vrot.slane %v82, %v125
    %s128 = sor.u32 256, 1
    %129 = vbcast.lane.b32.xlu0 %v126, %s128
    %v130 = vpop.permute.xlu0 %129
    %v131 = vlaneseq
    %v132 = vshrl.u32 %v131, 7
    %v133 = vsub.s32 5, %v132
    %v134 = vrot.slane %v82, %v133
    %s136 = sor.u32 256, 1
    %137 = vbcast.lane.b32.xlu0 %v134, %s136
    %v138 = vpop.permute.xlu0 %137
    %v139 = vlaneseq
    %v140 = vshrl.u32 %v139, 7
    %v141 = vsub.s32 6, %v140
    %v142 = vrot.slane %v82, %v141
    %s144 = sor.u32 256, 1
    %145 = vbcast.lane.b32.xlu0 %v142, %s144
    %v146 = vpop.permute.xlu0 %145
    %v147 = vlaneseq
    %v148 = vshrl.u32 %v147, 7
    %v149 = vsub.s32 7, %v148
    %v150 = vrot.slane %v82, %v149
    %s152 = sor.u32 256, 1
    %153 = vbcast.lane.b32.xlu0 %v150, %s152
    %v154 = vpop.permute.xlu0 %153
    %v155 = vmul.f32 %v83, %v98
    %v156 = vmul.f32 %v84, %v106
    %v157 = vmul.f32 %v85, %v114
    %v158 = vmul.f32 %v86, %v122
    %v159 = vmul.f32 %v87, %v130
    %v160 = vmul.f32 %v88, %v138
    %v161 = vmul.f32 %v89, %v146
    %v162 = vmul.f32 %v90, %v154
    %vm163 = vcmask 1042432
    %v164 = vsel %vm163, %v155, 0.0
    %v165 = vrot.slane %v164, 4
    %v166 = vadd.f32 %v164, %v165
    %v167 = vrot.slane %v166, 2
    %v168 = vadd.f32 %v166, %v167
    %v169 = vrot.slane %v168, 1
    %v170 = vadd.f32 %v168, %v169
    %v171 = vsel %vm163, %v156, 0.0
    %v172 = vrot.slane %v171, 4
    %v173 = vadd.f32 %v171, %v172
    %v174 = vrot.slane %v173, 2
    %v175 = vadd.f32 %v173, %v174
    %v176 = vrot.slane %v175, 1
    %v177 = vadd.f32 %v175, %v176
    %v178 = vsel %vm163, %v157, 0.0
    %v179 = vrot.slane %v178, 4
    %v180 = vadd.f32 %v178, %v179
    %v181 = vrot.slane %v180, 2
    %v182 = vadd.f32 %v180, %v181
    %v183 = vrot.slane %v182, 1
    %v184 = vadd.f32 %v182, %v183
    %v185 = vsel %vm163, %v158, 0.0
    %v186 = vrot.slane %v185, 4
    %v187 = vadd.f32 %v185, %v186
    %v188 = vrot.slane %v187, 2
    %v189 = vadd.f32 %v187, %v188
    %v190 = vrot.slane %v189, 1
    %v191 = vadd.f32 %v189, %v190
    %v192 = vsel %vm163, %v159, 0.0
    %v193 = vrot.slane %v192, 4
    %v194 = vadd.f32 %v192, %v193
    %v195 = vrot.slane %v194, 2
    %v196 = vadd.f32 %v194, %v195
    %v197 = vrot.slane %v196, 1
    %v198 = vadd.f32 %v196, %v197
    %v199 = vsel %vm163, %v160, 0.0
    %v200 = vrot.slane %v199, 4
    %v201 = vadd.f32 %v199, %v200
    %v202 = vrot.slane %v201, 2
    %v203 = vadd.f32 %v201, %v202
    %v204 = vrot.slane %v203, 1
    %v205 = vadd.f32 %v203, %v204
    %v206 = vsel %vm163, %v161, 0.0
    %v207 = vrot.slane %v206, 4
    %v208 = vadd.f32 %v206, %v207
    %v209 = vrot.slane %v208, 2
    %v210 = vadd.f32 %v208, %v209
    %v211 = vrot.slane %v210, 1
    %v212 = vadd.f32 %v210, %v211
    %v213 = vsel %vm163, %v162, 0.0
    %v214 = vrot.slane %v213, 4
    %v215 = vadd.f32 %v213, %v214
    %v216 = vrot.slane %v215, 2
    %v217 = vadd.f32 %v215, %v216
    %v218 = vrot.slane %v217, 1
    %v219 = vadd.f32 %v217, %v218
    %s220 = smul.u32 64, 1
    %s221 = sshll.u32 %s220, 4
    %222 = dma.done [#allocation3], %s221
    %v223 = vld [vmem:[#allocation2] sm:$0xff]
    %v224 = vld [vmem:[#allocation2 + $0x8] sm:$0xff]
    %v225 = vld [vmem:[#allocation2 + $0x10] sm:$0xff]
    %v226 = vld [vmem:[#allocation2 + $0x18] sm:$0xff]
    %v227 = vld [vmem:[#allocation2 + $0x20] sm:$0xff]
    %v228 = vld [vmem:[#allocation2 + $0x28] sm:$0xff]
    %v229 = vld [vmem:[#allocation2 + $0x30] sm:$0xff]
    %v230 = vld [vmem:[#allocation2 + $0x38] sm:$0xff]
    %v231 = vld [vmem:[%s1] sm:$0xff]
    %vm232 = vcmask 64512
    %v233 = vsel %vm232, %v231, -inf
    %234 = vmax.xlane.f32.xlu0 %v233
    %v235 = vpop.xlane.xlu0 %234
    %v236 = vsub.f32 %v231, %v235
    %v237 = vmul.f32 %v236, 1.442695
    %v238 = vpow.pop %v237
    %v239 = vld [vmem:[%s2] sm:$0xff]
    %v240 = vmul.f32 %v238, %v239
    %v241 = vsel %vm232, %v240, 0.0
    %242 = vadd.xlane.f32.xlu0 %v241
    %v243 = vpop.xlane.xlu0 %242
    %v244 = vmax.f32 %v243, 1e-30
    %v245 = vrcp.pop %v244
    %v246 = vmul.f32 %v240, %v245
    %v247 = vlaneseq
    %v248 = vshrl.u32 %v247, 7
    %v249 = vsub.s32 0, %v248
    %v250 = vrot.slane %v246, %v249
    %252 = vbcast.lane.b32.xlu0 %v250, 256
    %v253 = vpop.permute.xlu0 %252
    %v254 = vlaneseq
    %v255 = vshrl.u32 %v254, 7
    %v256 = vsub.s32 1, %v255
    %v257 = vrot.slane %v246, %v256
    %259 = vbcast.lane.b32.xlu0 %v257, 256
    %v260 = vpop.permute.xlu0 %259
    %v261 = vlaneseq
    %v262 = vshrl.u32 %v261, 7
    %v263 = vsub.s32 2, %v262
    %v264 = vrot.slane %v246, %v263
    %266 = vbcast.lane.b32.xlu0 %v264, 256
    %v267 = vpop.permute.xlu0 %266
    %v268 = vlaneseq
    %v269 = vshrl.u32 %v268, 7
    %v270 = vsub.s32 3, %v269
    %v271 = vrot.slane %v246, %v270
    %273 = vbcast.lane.b32.xlu0 %v271, 256
    %v274 = vpop.permute.xlu0 %273
    %v275 = vlaneseq
    %v276 = vshrl.u32 %v275, 7
    %v277 = vsub.s32 4, %v276
    %v278 = vrot.slane %v246, %v277
    %280 = vbcast.lane.b32.xlu0 %v278, 256
    %v281 = vpop.permute.xlu0 %280
    %v282 = vlaneseq
    %v283 = vshrl.u32 %v282, 7
    %v284 = vsub.s32 5, %v283
    %v285 = vrot.slane %v246, %v284
    %287 = vbcast.lane.b32.xlu0 %v285, 256
    %v288 = vpop.permute.xlu0 %287
    %v289 = vlaneseq
    %v290 = vshrl.u32 %v289, 7
    %v291 = vsub.s32 6, %v290
    %v292 = vrot.slane %v246, %v291
    %294 = vbcast.lane.b32.xlu0 %v292, 256
    %v295 = vpop.permute.xlu0 %294
    %v296 = vlaneseq
    %v297 = vshrl.u32 %v296, 7
    %v298 = vsub.s32 7, %v297
    %v299 = vrot.slane %v246, %v298
    %301 = vbcast.lane.b32.xlu0 %v299, 256
    %v302 = vpop.permute.xlu0 %301
    %v303 = vmul.f32 %v223, %v253
    %v304 = vmul.f32 %v224, %v260
    %v305 = vmul.f32 %v225, %v267
    %v306 = vmul.f32 %v226, %v274
    %v307 = vmul.f32 %v227, %v281
    %v308 = vmul.f32 %v228, %v288
    %v309 = vmul.f32 %v229, %v295
    %v310 = vmul.f32 %v230, %v302
    %v311 = vrot.slane %v303, 4
    %v312 = vadd.f32 %v303, %v311
    %v313 = vrot.slane %v312, 2
    %v314 = vadd.f32 %v312, %v313
    %v315 = vrot.slane %v314, 1
    %v316 = vadd.f32 %v314, %v315
    %v317 = vrot.slane %v304, 4
    %v318 = vadd.f32 %v304, %v317
    %v319 = vrot.slane %v318, 2
    %v320 = vadd.f32 %v318, %v319
    %v321 = vrot.slane %v320, 1
    %v322 = vadd.f32 %v320, %v321
    %v323 = vrot.slane %v305, 4
    %v324 = vadd.f32 %v305, %v323
    %v325 = vrot.slane %v324, 2
    %v326 = vadd.f32 %v324, %v325
    %v327 = vrot.slane %v326, 1
    %v328 = vadd.f32 %v326, %v327
    %v329 = vrot.slane %v306, 4
    %v330 = vadd.f32 %v306, %v329
    %v331 = vrot.slane %v330, 2
    %v332 = vadd.f32 %v330, %v331
    %v333 = vrot.slane %v332, 1
    %v334 = vadd.f32 %v332, %v333
    %v335 = vrot.slane %v307, 4
    %v336 = vadd.f32 %v307, %v335
    %v337 = vrot.slane %v336, 2
    %v338 = vadd.f32 %v336, %v337
    %v339 = vrot.slane %v338, 1
    %v340 = vadd.f32 %v338, %v339
    %v341 = vrot.slane %v308, 4
    %v342 = vadd.f32 %v308, %v341
    %v343 = vrot.slane %v342, 2
    %v344 = vadd.f32 %v342, %v343
    %v345 = vrot.slane %v344, 1
    %v346 = vadd.f32 %v344, %v345
    %v347 = vrot.slane %v309, 4
    %v348 = vadd.f32 %v309, %v347
    %v349 = vrot.slane %v348, 2
    %v350 = vadd.f32 %v348, %v349
    %v351 = vrot.slane %v350, 1
    %v352 = vadd.f32 %v350, %v351
    %v353 = vrot.slane %v310, 4
    %v354 = vadd.f32 %v310, %v353
    %v355 = vrot.slane %v354, 2
    %v356 = vadd.f32 %v354, %v355
    %v357 = vrot.slane %v356, 1
    %v358 = vadd.f32 %v356, %v357
    %360 = vset.pattern.permute.xlu0 0
    %361 = vperm.xlu0 %360, %v82
    %v362 = vpop.permute.xlu0 %361
    %vm372 = vcmask 1041409
    %v373 = vsel %vm372, %v322, %v316
    %vm374 = vcmask 1042434
    %v375 = vsel %vm374, %v328, %v373
    %vm376 = vcmask 1043459
    %v377 = vsel %vm376, %v334, %v375
    %vm378 = vcmask 1044484
    %v379 = vsel %vm378, %v340, %v377
    %vm380 = vcmask 1045509
    %v381 = vsel %vm380, %v346, %v379
    %vm382 = vcmask 1046534
    %v383 = vsel %vm382, %v352, %v381
    %vm384 = vcmask 1047559
    %v385 = vsel %vm384, %v358, %v383
    %v387 = vmul.f32 %v362, %v385
    %v396 = vsel %vm372, %v177, %v170
    %v397 = vsel %vm374, %v184, %v396
    %v398 = vsel %vm376, %v191, %v397
    %v399 = vsel %vm378, %v198, %v398
    %v400 = vsel %vm380, %v205, %v399
    %v401 = vsel %vm382, %v212, %v400
    %v402 = vsel %vm384, %v219, %v401
    %v404 = vadd.f32 %v387, %v402
    %405 = vst [vmem:[#allocation6] sm:$0xff] %v404
    // Predicated region
    $region33: #{tpu_custom_call.1} parent=1 // pred_check
      _
    $region34: #{tpu_custom_call.1} parent=1 // pred_check_branch
      %407 = sbr.rel (0) target = $region36
    $region35: #{tpu_custom_call.1} parent=1 // pred_region
      %s409 = ssub.s32 128, 128
      %410 = vsyncadd [#allocation7], %s409
      %s412 = sshll.u32 [#allocation6], 4
      %s413 = int_to_ptr.vmem [resolvable:$true] %s412
      %415 = dma.vmem_to_hbm [thread:$0]  %s413, 128, %s7, [#allocation7]
    $region36: #{tpu_custom_call.1} parent=1 // pred_fallthru
      _
    // Predicated region
    $region37: #{tpu_custom_call.1} parent=1 // pred_check
      _
    $region38: #{tpu_custom_call.1} parent=1 // pred_check_branch
      %417 = sbr.rel (0) target = $region40
    $region39: #{tpu_custom_call.1} parent=1 // pred_region
      %418 = dma.done [#allocation7], 128
    $region40: #{tpu_custom_call.1} parent=1 // pred_fallthru
      _
    %419 = vsyncpa [#allocation7], 1
  %420 = vsyncmov [#allocation3]
  %s421 = vpop.sfrf %420
  %p422 = scmp.eq.s32.totalorder %s421, 0
  %p423 = pneg %p422
  %425 = shalt.err (%p423)

</llo_original>
